<compile_context>
chip_gen: v6e
topology: v6e:2x2x1
jax: 0.10.0
libtpu: 0.0.40
codegen_flags: <defaults>
</compile_context>

<pallas_src>
import functools

import jax
import jax.numpy as jnp
from jax.experimental import pallas as pl
from jax.experimental.pallas import tpu as pltpu

NEG_INF = -1e30          # finite "minus infinity" (avoids inf-inf NaNs in the online LSE)
COS_EPS = 1e-8           # torch.nn.CosineSimilarity eps


def _round_up(x, m):
    return (x + m - 1) // m * m


def _ntxent_kernel(zq_ref, zk_ref, loss_ref,
                   qn_ref, m_ref, l_ref, pos_ref, acc_ref,
                   *, batch, rows, inv_temp, tile):
    ri = pl.program_id(0)          # row tile
    ci = pl.program_id(1)          # column tile (reduction axis, last)
    nr = pl.num_programs(0)
    nc = pl.num_programs(1)

    @pl.when((ri == 0) & (ci == 0))
    def _init_loss_acc():
        acc_ref[...] = jnp.zeros_like(acc_ref)

    @pl.when(ci == 0)
    def _init_row_tile():
        # Normalize the query tile once per row tile and cache it (cosine denom).
        q = zq_ref[...]
        ssq = jnp.sum(q * q, axis=1, keepdims=True)
        qn_ref[...] = q * jax.lax.rsqrt(jnp.maximum(ssq, COS_EPS * COS_EPS))
        m_ref[...] = jnp.full_like(m_ref, NEG_INF)
        l_ref[...] = jnp.zeros_like(l_ref)
        pos_ref[...] = jnp.zeros_like(pos_ref)

    # Normalize the key tile, then the similarity tile on the MXU.
    k = zk_ref[...]
    ssk = jnp.sum(k * k, axis=1, keepdims=True)
    kn = k * jax.lax.rsqrt(jnp.maximum(ssk, COS_EPS * COS_EPS))

    s = jnp.einsum('qd,kd->qk', qn_ref[...], kn,
                   preferred_element_type=jnp.float32) * inv_temp      # [T, T]

    row_ids = ri * tile + jax.lax.broadcasted_iota(jnp.int32, (tile, tile), 0)
    col_ids = ci * tile + jax.lax.broadcasted_iota(jnp.int32, (tile, tile), 1)

    # Logits for row r = sim[r, c] for every c != r (and c inside the real 2B
    # columns); this is exactly [positive, negatives] of the PyTorch module.
    valid = (col_ids < rows) & (col_ids != row_ids)
    s_masked = jnp.where(valid, s, NEG_INF)

    # Positive column: r+B for r < B, r-B otherwise.  It lands in exactly one
    # column tile, so accumulation across ci picks it up exactly once.
    pcol = jnp.where(row_ids < batch, row_ids + batch, row_ids - batch)
    pos_ref[...] += jnp.sum(jnp.where(col_ids == pcol, s, 0.0),
                            axis=1, keepdims=True)

    # Online (flash-style) log-sum-exp across column tiles.
    m_prev = m_ref[...]
    m_new = jnp.maximum(m_prev, jnp.max(s_masked, axis=1, keepdims=True))
    alpha = jnp.exp(m_prev - m_new)
    p = jnp.exp(s_masked - m_new)
    l_ref[...] = alpha * l_ref[...] + jnp.sum(p, axis=1, keepdims=True)
    m_ref[...] = m_new

    @pl.when(ci == nc - 1)
    def _finish_row_tile():
        lse = m_ref[...] + jnp.log(l_ref[...])               # [T, 1]
        row_loss = lse - pos_ref[...]
        rids = ri * tile + jax.lax.broadcasted_iota(jnp.int32, (tile, 1), 0)
        row_loss = jnp.where(rids < rows, row_loss, 0.0)     # drop padded rows
        acc_ref[...] += jnp.sum(row_loss, axis=0, keepdims=True) * (1.0 / rows)

    @pl.when((ci == nc - 1) & (ri == nr - 1))
    def _write_out():
        loss_ref[...] = acc_ref[...]


def ntxent_loss(z_i, z_j, temperature=0.5):
    """NT-Xent loss; z_i, z_j: [B, D] projection vectors from the two views."""
    assert z_i.shape == z_j.shape and z_i.ndim == 2
    B, D = z_i.shape
    R = 2 * B

    Dp = _round_up(D, 128)
    T = _round_up(R, 8) if R <= 512 else 256       # single tile for small 2B, else 256 (MXU-sized)
    Rp = _round_up(R, T)

    z = jnp.concatenate([z_i, z_j], axis=0).astype(jnp.float32)
    zp = jnp.pad(z, ((0, Rp - R), (0, Dp - D)))

    nr = Rp // T
    nc = Rp // T

    kernel = functools.partial(_ntxent_kernel, batch=B, rows=R,
                               inv_temp=1.0 / float(temperature), tile=T)

    out = pl.pallas_call(
        kernel,
        out_shape=jax.ShapeDtypeStruct((1, 1), jnp.float32),
        grid_spec=pltpu.PrefetchScalarGridSpec(
            num_scalar_prefetch=0,
            grid=(nr, nc),
            in_specs=[
                pl.BlockSpec((T, Dp), lambda i, j: (i, 0)),   # query rows
                pl.BlockSpec((T, Dp), lambda i, j: (j, 0)),   # key rows (columns of sim)
            ],
            out_specs=pl.BlockSpec((1, 1), lambda i, j: (0, 0)),
            scratch_shapes=[
                pltpu.VMEM((T, Dp), jnp.float32),   # cached normalized query tile
                pltpu.VMEM((T, 1), jnp.float32),    # running max
                pltpu.VMEM((T, 1), jnp.float32),    # running sum-exp
                pltpu.VMEM((T, 1), jnp.float32),    # positive similarity per row
                pltpu.VMEM((1, 1), jnp.float32),    # scalar loss accumulator
            ],
        ),
        compiler_params=pltpu.CompilerParams(
            dimension_semantics=("arbitrary", "arbitrary")),
    )(zp, zp)
    return out[0, 0]


def ntxent_reference(z_i, z_j, temperature=0.5):
    """Pure-JAX reference mirroring the PyTorch NTXentLoss forward."""
    B = z_i.shape[0]
    R = 2 * B
    reps = jnp.concatenate([z_i, z_j], axis=0).astype(jnp.float32)
    ss = jnp.sum(reps * reps, axis=1, keepdims=True)
    rn = reps * jax.lax.rsqrt(jnp.maximum(ss, COS_EPS * COS_EPS))
    sim = (rn @ rn.T) / temperature
    pos_idx = jnp.concatenate([jnp.arange(B) + B, jnp.arange(B)])
    pos = sim[jnp.arange(R), pos_idx]
    sim_nd = jnp.where(jnp.eye(R, dtype=bool), -jnp.inf, sim)
    lse = jax.nn.logsumexp(sim_nd, axis=1)
    return jnp.sum(lse - pos) / R


if __name__ == "__main__":
    key = jax.random.PRNGKey(0)
    ki, kj = jax.random.split(key)

    # NTXentLoss default batch_size=32; SimCLR projection dim = 128.
    batch, dim = 32, 128
    z_i = jax.random.normal(ki, (batch, dim), jnp.float32)
    z_j = jax.random.normal(kj, (batch, dim), jnp.float32)
    # "Normalized projection vectors from the two augmented views"
    z_i = z_i / jnp.linalg.norm(z_i, axis=1, keepdims=True)
    z_j = z_j / jnp.linalg.norm(z_j, axis=1, keepdims=True)

    loss = ntxent_loss(z_i, z_j, temperature=0.5)
    jax.block_until_ready(loss)

    ref = ntxent_reference(z_i, z_j, temperature=0.5)
    assert bool(jnp.isfinite(loss)), loss
    assert abs(float(loss) - float(ref)) < 5e-3, (float(loss), float(ref))
    print("KERNEL_OK")
</pallas_src>

<mosaic_0001>
module attributes {stable_mosaic.version = 11 : i64} {
  func.func @_ntxent_kernel(%arg0: i32, %arg1: i32, %arg2: memref<64x128xf32, #tpu.memory_space<vmem>>, %arg3: memref<64x128xf32, #tpu.memory_space<vmem>>, %arg4: memref<1x1xf32, #tpu.memory_space<vmem>>, %arg5: memref<64x128xf32, #tpu.memory_space<vmem>>, %arg6: memref<64x1xf32, #tpu.memory_space<vmem>>, %arg7: memref<64x1xf32, #tpu.memory_space<vmem>>, %arg8: memref<64x1xf32, #tpu.memory_space<vmem>>, %arg9: memref<1x1xf32, #tpu.memory_space<vmem>>) attributes {dimension_semantics = [#tpu.dimension_semantics<arbitrary>, #tpu.dimension_semantics<arbitrary>], iteration_bounds = array<i64: 1, 1>, scalar_prefetch = 0 : i64, scratch_operands = 5 : i64, tpu.core_type = #tpu.core_type<tc>, window_params = [{transform_indices = @transform_0, window_bounds = array<i64: 64, 128>}, {transform_indices = @transform_1, window_bounds = array<i64: 64, 128>}, {pipeline_mode = #tpu.pipeline_mode<synchronous>, transform_indices = @transform_2, window_bounds = array<i64: 1, 1>}]} {
    %c0_i32 = arith.constant 0 : i32
    %0 = arith.cmpi eq, %arg0, %c0_i32 : i32
    %c0_i32_0 = arith.constant 0 : i32
    %1 = arith.cmpi eq, %arg1, %c0_i32_0 : i32
    %2 = arith.andi %0, %1 : i1
    %3 = arith.extui %2 : i1 to i32
    %c0_i32_1 = arith.constant 0 : i32
    %4 = arith.cmpi ne, %3, %c0_i32_1 : i32
    scf.if %4 {
      %cst_36 = arith.constant 0.000000e+00 : f32
      %74 = vector.broadcast %cst_36 : f32 to vector<1x1xf32>
      %c0_37 = arith.constant 0 : index
      %c0_38 = arith.constant 0 : index
      %75 = vector.load %arg9[%c0_37, %c0_38] : memref<1x1xf32, #tpu.memory_space<vmem>>, vector<1x1xf32>
      tpu.vector_store %arg9[%c0_37, %c0_38], %74 {strides = array<i32>} : memref<1x1xf32, #tpu.memory_space<vmem>>, vector<1x1xf32>,
    } else {
    }
    %c0_i32_2 = arith.constant 0 : i32
    %5 = arith.cmpi eq, %arg1, %c0_i32_2 : i32
    %6 = arith.extui %5 : i1 to i32
    %c0_i32_3 = arith.constant 0 : i32
    %7 = arith.cmpi ne, %6, %c0_i32_3 : i32
    scf.if %7 {
      %c0_36 = arith.constant 0 : index
      %c0_37 = arith.constant 0 : index
      %74 = vector.load %arg2[%c0_36, %c0_37] : memref<64x128xf32, #tpu.memory_space<vmem>>, vector<64x128xf32>
      %75 = arith.mulf %74, %74 : vector<64x128xf32>
      %cst_38 = arith.constant dense<0.000000e+00> : vector<64xf32>
      %76 = vector.multi_reduction <add>, %75, %cst_38 [1] : vector<64x128xf32> to vector<64xf32>
      %77 = vector.shape_cast %76 : vector<64xf32> to vector<64x1xf32>
      %cst_39 = arith.constant 1.000000e-16 : f32
      %78 = vector.broadcast %cst_39 : f32 to vector<64x1xf32>
      %79 = arith.maximumf %77, %78 : vector<64x1xf32>
      %80 = math.rsqrt %79 : vector<64x1xf32>
      %81 = vector.broadcast %80 : vector<64x1xf32> to vector<64x128xf32>
      %82 = arith.mulf %74, %81 : vector<64x128xf32>
      %c0_40 = arith.constant 0 : index
      %c0_41 = arith.constant 0 : index
      %83 = vector.load %arg5[%c0_40, %c0_41] : memref<64x128xf32, #tpu.memory_space<vmem>>, vector<64x128xf32>
      tpu.vector_store %arg5[%c0_40, %c0_41], %82 {strides = array<i32>} : memref<64x128xf32, #tpu.memory_space<vmem>>, vector<64x128xf32>,
      %cst_42 = arith.constant -1.000000e+30 : f32
      %84 = vector.broadcast %cst_42 : f32 to vector<64x1xf32>
      %c0_43 = arith.constant 0 : index
      %c0_44 = arith.constant 0 : index
      %85 = vector.load %arg6[%c0_43, %c0_44] : memref<64x1xf32, #tpu.memory_space<vmem>>, vector<64x1xf32>
      tpu.vector_store %arg6[%c0_43, %c0_44], %84 {strides = array<i32>} : memref<64x1xf32, #tpu.memory_space<vmem>>, vector<64x1xf32>,
      %cst_45 = arith.constant 0.000000e+00 : f32
      %86 = vector.broadcast %cst_45 : f32 to vector<64x1xf32>
      %c0_46 = arith.constant 0 : index
      %c0_47 = arith.constant 0 : index
      %87 = vector.load %arg7[%c0_46, %c0_47] : memref<64x1xf32, #tpu.memory_space<vmem>>, vector<64x1xf32>
      tpu.vector_store %arg7[%c0_46, %c0_47], %86 {strides = array<i32>} : memref<64x1xf32, #tpu.memory_space<vmem>>, vector<64x1xf32>,
      %cst_48 = arith.constant 0.000000e+00 : f32
      %88 = vector.broadcast %cst_48 : f32 to vector<64x1xf32>
      %c0_49 = arith.constant 0 : index
      %c0_50 = arith.constant 0 : index
      %89 = vector.load %arg8[%c0_49, %c0_50] : memref<64x1xf32, #tpu.memory_space<vmem>>, vector<64x1xf32>
      tpu.vector_store %arg8[%c0_49, %c0_50], %88 {strides = array<i32>} : memref<64x1xf32, #tpu.memory_space<vmem>>, vector<64x1xf32>,
    } else {
    }
    %c0 = arith.constant 0 : index
    %c0_4 = arith.constant 0 : index
    %8 = vector.load %arg3[%c0, %c0_4] : memref<64x128xf32, #tpu.memory_space<vmem>>, vector<64x128xf32>
    %9 = arith.mulf %8, %8 : vector<64x128xf32>
    %cst = arith.constant dense<0.000000e+00> : vector<64xf32>
    %10 = vector.multi_reduction <add>, %9, %cst [1] : vector<64x128xf32> to vector<64xf32>
    %11 = vector.shape_cast %10 : vector<64xf32> to vector<64x1xf32>
    %cst_5 = arith.constant 1.000000e-16 : f32
    %12 = vector.broadcast %cst_5 : f32 to vector<64x1xf32>
    %13 = arith.maximumf %11, %12 : vector<64x1xf32>
    %14 = math.rsqrt %13 : vector<64x1xf32>
    %15 = vector.broadcast %14 : vector<64x1xf32> to vector<64x128xf32>
    %16 = arith.mulf %8, %15 : vector<64x128xf32>
    %c0_6 = arith.constant 0 : index
    %c0_7 = arith.constant 0 : index
    %17 = vector.load %arg5[%c0_6, %c0_7] : memref<64x128xf32, #tpu.memory_space<vmem>>, vector<64x128xf32>
    "tpu.trace_start"() <{level = 10 : i32, message = "qd,kd->qk"}> : () -> ()
    %cst_8 = arith.constant dense<0.000000e+00> : vector<64x64xf32>
    %18 = tpu.matmul %17, %16, %cst_8 {dimension_numbers = #tpu.dot_dimension_numbers<[1], [1], [0], [0], [0, 0, 1, 0], [], []>} : vector<64x128xf32>, vector<64x128xf32>, vector<64x64xf32> -> vector<64x64xf32>
    "tpu.trace_stop"() : () -> ()
    %cst_9 = arith.constant 2.000000e+00 : f32
    %19 = vector.broadcast %cst_9 : f32 to vector<64x64xf32>
    %20 = arith.mulf %18, %19 : vector<64x64xf32>
    %c64_i32 = arith.constant 64 : i32
    %21 = arith.muli %arg0, %c64_i32 : i32
    %22 = tpu.iota {dimensions = array<i32: 0>} : vector<64x64xi32>
    %23 = vector.broadcast %21 : i32 to vector<64x64xi32>
    %24 = arith.addi %23, %22 : vector<64x64xi32>
    %c64_i32_10 = arith.constant 64 : i32
    %25 = arith.muli %arg1, %c64_i32_10 : i32
    %26 = tpu.iota {dimensions = array<i32: 1>} : vector<64x64xi32>
    %27 = vector.broadcast %25 : i32 to vector<64x64xi32>
    %28 = arith.addi %27, %26 : vector<64x64xi32>
    %c64_i32_11 = arith.constant 64 : i32
    %29 = vector.broadcast %c64_i32_11 : i32 to vector<64x64xi32>
    %30 = arith.cmpi slt, %28, %29 : vector<64x64xi32>
    %31 = arith.cmpi ne, %28, %24 : vector<64x64xi32>
    %32 = arith.andi %30, %31 : vector<64x64xi1>
    %cst_12 = arith.constant -1.000000e+30 : f32
    %33 = vector.broadcast %cst_12 : f32 to vector<64x64xf32>
    %34 = arith.select %32, %20, %33 : vector<64x64xi1>, vector<64x64xf32>
    %c32_i32 = arith.constant 32 : i32
    %35 = vector.broadcast %c32_i32 : i32 to vector<64x64xi32>
    %36 = arith.cmpi slt, %24, %35 : vector<64x64xi32>
    %c32_i32_13 = arith.constant 32 : i32
    %37 = vector.broadcast %c32_i32_13 : i32 to vector<64x64xi32>
    %38 = arith.addi %24, %37 : vector<64x64xi32>
    %c32_i32_14 = arith.constant 32 : i32
    %39 = vector.broadcast %c32_i32_14 : i32 to vector<64x64xi32>
    %40 = arith.subi %24, %39 : vector<64x64xi32>
    %41 = arith.select %36, %38, %40 : vector<64x64xi1>, vector<64x64xi32>
    %c0_15 = arith.constant 0 : index
    %c0_16 = arith.constant 0 : index
    %42 = vector.load %arg8[%c0_15, %c0_16] : memref<64x1xf32, #tpu.memory_space<vmem>>, vector<64x1xf32>
    %43 = arith.cmpi eq, %28, %41 : vector<64x64xi32>
    %cst_17 = arith.constant 0.000000e+00 : f32
    %44 = vector.broadcast %cst_17 : f32 to vector<64x64xf32>
    %45 = arith.select %43, %20, %44 : vector<64x64xi1>, vector<64x64xf32>
    %cst_18 = arith.constant dense<0.000000e+00> : vector<64xf32>
    %46 = vector.multi_reduction <add>, %45, %cst_18 [1] : vector<64x64xf32> to vector<64xf32>
    %47 = vector.shape_cast %46 : vector<64xf32> to vector<64x1xf32>
    %48 = arith.addf %42, %47 : vector<64x1xf32>
    %c0_19 = arith.constant 0 : index
    %c0_20 = arith.constant 0 : index
    %49 = vector.load %arg8[%c0_19, %c0_20] : memref<64x1xf32, #tpu.memory_space<vmem>>, vector<64x1xf32>
    tpu.vector_store %arg8[%c0_19, %c0_20], %48 {strides = array<i32>} : memref<64x1xf32, #tpu.memory_space<vmem>>, vector<64x1xf32>,
    %c0_21 = arith.constant 0 : index
    %c0_22 = arith.constant 0 : index
    %50 = vector.load %arg6[%c0_21, %c0_22] : memref<64x1xf32, #tpu.memory_space<vmem>>, vector<64x1xf32>
    %cst_23 = arith.constant dense<0xFF800000> : vector<64xf32>
    %51 = vector.multi_reduction <maximumf>, %34, %cst_23 [1] : vector<64x64xf32> to vector<64xf32>
    %52 = vector.shape_cast %51 : vector<64xf32> to vector<64x1xf32>
    %53 = arith.maximumf %50, %52 : vector<64x1xf32>
    %54 = arith.subf %50, %53 : vector<64x1xf32>
    %55 = math.exp %54 : vector<64x1xf32>
    %56 = vector.broadcast %53 : vector<64x1xf32> to vector<64x64xf32>
    %57 = arith.subf %34, %56 : vector<64x64xf32>
    %58 = math.exp %57 : vector<64x64xf32>
    %c0_24 = arith.constant 0 : index
    %c0_25 = arith.constant 0 : index
    %59 = vector.load %arg7[%c0_24, %c0_25] : memref<64x1xf32, #tpu.memory_space<vmem>>, vector<64x1xf32>
    %60 = arith.mulf %55, %59 : vector<64x1xf32>
    %cst_26 = arith.constant dense<0.000000e+00> : vector<64xf32>
    %61 = vector.multi_reduction <add>, %58, %cst_26 [1] : vector<64x64xf32> to vector<64xf32>
    %62 = vector.shape_cast %61 : vector<64xf32> to vector<64x1xf32>
    %63 = arith.addf %60, %62 : vector<64x1xf32>
    %c0_27 = arith.constant 0 : index
    %c0_28 = arith.constant 0 : index
    %64 = vector.load %arg7[%c0_27, %c0_28] : memref<64x1xf32, #tpu.memory_space<vmem>>, vector<64x1xf32>
    tpu.vector_store %arg7[%c0_27, %c0_28], %63 {strides = array<i32>} : memref<64x1xf32, #tpu.memory_space<vmem>>, vector<64x1xf32>,
    %c0_29 = arith.constant 0 : index
    %c0_30 = arith.constant 0 : index
    %65 = vector.load %arg6[%c0_29, %c0_30] : memref<64x1xf32, #tpu.memory_space<vmem>>, vector<64x1xf32>
    tpu.vector_store %arg6[%c0_29, %c0_30], %53 {strides = array<i32>} : memref<64x1xf32, #tpu.memory_space<vmem>>, vector<64x1xf32>,
    %c0_i32_31 = arith.constant 0 : i32
    %66 = arith.cmpi eq, %arg1, %c0_i32_31 : i32
    %67 = arith.extui %66 : i1 to i32
    %c0_i32_32 = arith.constant 0 : i32
    %68 = arith.cmpi ne, %67, %c0_i32_32 : i32
    scf.if %68 {
      %c0_36 = arith.constant 0 : index
      %c0_37 = arith.constant 0 : index
      %74 = vector.load %arg6[%c0_36, %c0_37] : memref<64x1xf32, #tpu.memory_space<vmem>>, vector<64x1xf32>
      %c0_38 = arith.constant 0 : index
      %c0_39 = arith.constant 0 : index
      %75 = vector.load %arg7[%c0_38, %c0_39] : memref<64x1xf32, #tpu.memory_space<vmem>>, vector<64x1xf32>
      %76 = math.log %75 : vector<64x1xf32>
      %77 = arith.addf %74, %76 : vector<64x1xf32>
      %c0_40 = arith.constant 0 : index
      %c0_41 = arith.constant 0 : index
      %78 = vector.load %arg8[%c0_40, %c0_41] : memref<64x1xf32, #tpu.memory_space<vmem>>, vector<64x1xf32>
      %79 = arith.subf %77, %78 : vector<64x1xf32>
      %c64_i32_42 = arith.constant 64 : i32
      %80 = arith.muli %arg0, %c64_i32_42 : i32
      %81 = tpu.iota {dimensions = array<i32: 0>} : vector<64x1xi32>
      %82 = vector.broadcast %80 : i32 to vector<64x1xi32>
      %83 = arith.addi %82, %81 : vector<64x1xi32>
      %c64_i32_43 = arith.constant 64 : i32
      %84 = vector.broadcast %c64_i32_43 : i32 to vector<64x1xi32>
      %85 = arith.cmpi slt, %83, %84 : vector<64x1xi32>
      %cst_44 = arith.constant 0.000000e+00 : f32
      %86 = vector.broadcast %cst_44 : f32 to vector<64x1xf32>
      %87 = arith.select %85, %79, %86 : vector<64x1xi1>, vector<64x1xf32>
      %c0_45 = arith.constant 0 : index
      %c0_46 = arith.constant 0 : index
      %88 = vector.load %arg9[%c0_45, %c0_46] : memref<1x1xf32, #tpu.memory_space<vmem>>, vector<1x1xf32>
      %cst_47 = arith.constant dense<0.000000e+00> : vector<1xf32>
      %89 = vector.multi_reduction <add>, %87, %cst_47 [0] : vector<64x1xf32> to vector<1xf32>
      %90 = vector.shape_cast %89 : vector<1xf32> to vector<1x1xf32>
      %cst_48 = arith.constant 1.562500e-02 : f32
      %91 = vector.broadcast %cst_48 : f32 to vector<1x1xf32>
      %92 = arith.mulf %90, %91 : vector<1x1xf32>
      %93 = arith.addf %88, %92 : vector<1x1xf32>
      %c0_49 = arith.constant 0 : index
      %c0_50 = arith.constant 0 : index
      %94 = vector.load %arg9[%c0_49, %c0_50] : memref<1x1xf32, #tpu.memory_space<vmem>>, vector<1x1xf32>
      tpu.vector_store %arg9[%c0_49, %c0_50], %93 {strides = array<i32>} : memref<1x1xf32, #tpu.memory_space<vmem>>, vector<1x1xf32>,
    } else {
    }
    %c0_i32_33 = arith.constant 0 : i32
    %69 = arith.cmpi eq, %arg1, %c0_i32_33 : i32
    %c0_i32_34 = arith.constant 0 : i32
    %70 = arith.cmpi eq, %arg0, %c0_i32_34 : i32
    %71 = arith.andi %69, %70 : i1
    %72 = arith.extui %71 : i1 to i32
    %c0_i32_35 = arith.constant 0 : i32
    %73 = arith.cmpi ne, %72, %c0_i32_35 : i32
    scf.if %73 {
      %c0_36 = arith.constant 0 : index
      %c0_37 = arith.constant 0 : index
      %74 = vector.load %arg9[%c0_36, %c0_37] : memref<1x1xf32, #tpu.memory_space<vmem>>, vector<1x1xf32>
      %c0_38 = arith.constant 0 : index
      %c0_39 = arith.constant 0 : index
      %75 = vector.load %arg4[%c0_38, %c0_39] : memref<1x1xf32, #tpu.memory_space<vmem>>, vector<1x1xf32>
      tpu.vector_store %arg4[%c0_38, %c0_39], %74 {strides = array<i32>} : memref<1x1xf32, #tpu.memory_space<vmem>>, vector<1x1xf32>,
    } else {
    }
    return
  }
  func.func @transform_0(%arg0: i32, %arg1: i32) -> (i32, i32) {
    %c0_i32 = arith.constant 0 : i32
    %c0_i32_0 = arith.constant 0 : i32
    return %arg0, %c0_i32 : i32, i32
  }
  func.func @transform_1(%arg0: i32, %arg1: i32) -> (i32, i32) {
    %c0_i32 = arith.constant 0 : i32
    %c0_i32_0 = arith.constant 0 : i32
    return %arg1, %c0_i32 : i32, i32
  }
  func.func @transform_2(%arg0: i32, %arg1: i32) -> (i32, i32) {
    %c0_i32 = arith.constant 0 : i32
    %c0_i32_0 = arith.constant 0 : i32
    %c0_i32_1 = arith.constant 0 : i32
    return %c0_i32, %c0_i32_0 : i32, i32
  }
}

</mosaic_0001>

<llo_original>
// kernel: tpu_custom_call.1
$region0: #{tpu_custom_call.1}
  #allocation0 [shape = 'u32[]', space=smem, size = 0x4, offset = 0x4, fixed_abs, tag = 'smem constant byte address 0x4 - core index']
  #allocation1 [shape = 'u32[144,128]{1,0:T(1,128)}', space=vmem, size = 0x12000, scoped, tag = 'internal scratch']
  #allocation2 [shape = 'f32[64,128]{1,0:T(8,128)}', space=vmem, size = 0x8000, scoped, tag = 'scratch operand']
  #allocation3 [shape = 'f32[64,1]{1,0:T(8,128)}', space=vmem, size = 0x8000, scoped, tag = 'scratch operand']
  #allocation4 [shape = 'f32[64,1]{1,0:T(8,128)}', space=vmem, size = 0x8000, scoped, tag = 'scratch operand']
  #allocation5 [shape = 'f32[64,1]{1,0:T(8,128)}', space=vmem, size = 0x8000, scoped, tag = 'scratch operand']
  #allocation6 [shape = 'f32[1,1]{1,0:T(1,128)}', space=vmem, size = 0x200, scoped, tag = 'scratch operand']
  %s0 = inlined_call_operand.hbm [shape: f32[64,128], index: 0, kind: input, shape index: {}]
  %s1 = inlined_call_operand.hbm [shape: f32[64,128], index: 1, kind: input, shape index: {}]
  %s2 = inlined_call_operand.hbm [shape: f32[1,1], index: 2, kind: output, shape index: {}]
  %s3 = sld [smem:[#allocation0]]
  $region42: #{tpu_custom_call.1} parent=0
    _
  %s5 = ssub.s32 1, %s3
  %s6 = scalar_select 0, %s5, %s3
  $region1: #{tpu_custom_call.1} parent=0
    #allocation7 [shape = 'u8[32768]{0}', space=vmem, size = 0x8000, scoped, tag = 'input window, operand 0, single buffered']
    #allocation8 [shape = 's32[1]{0}', space=sflag, size = 0x4, scoped, tag = 'scoped memory for tpu_custom_call.1']
    #allocation9 [shape = 's32[1]{0}', space=sflag, size = 0x4, scoped, tag = 'scoped memory for tpu_custom_call.1']
    #allocation10 [shape = 'u8[32768]{0}', space=vmem, size = 0x8000, scoped, tag = 'input window, operand 1, single buffered']
    #allocation11 [shape = 's32[1]{0}', space=sflag, size = 0x4, scoped, tag = 'scoped memory for tpu_custom_call.1']
    #allocation12 [shape = 'u8[512]{0}', space=vmem, size = 0x400, scoped, tag = 'output window, operand 0, single buffered']
    %7 = vsyncpa [#allocation8], 0
    %8 = vsyncpa [#allocation11], 0
    %9 = vsyncpa [#allocation9], 0
    // Predicated region
    $region2: #{tpu_custom_call.1} parent=1 // pred_check
      _
    $region3: #{tpu_custom_call.1} parent=1 // pred_check_branch
      %11 = sbr.rel (0) target = $region5
    $region4: #{tpu_custom_call.1} parent=1 // pred_region
      %s13 = ssub.s32 1024, 1024
      %14 = vsyncadd [#allocation8], %s13
      %s15 = sshll.u32 [#allocation7], 4
      %s16 = int_to_ptr.vmem [resolvable:$true] %s15
      %21 = dma.hbm_to_vmem [thread:$0]  %s0, 1024, %s16, [#allocation8], 128, 128, 8
    $region5: #{tpu_custom_call.1} parent=1 // pred_fallthru
      _
    // Predicated region
    $region6: #{tpu_custom_call.1} parent=1 // pred_check
      _
    $region7: #{tpu_custom_call.1} parent=1 // pred_check_branch
      %23 = sbr.rel (0) target = $region9
    $region8: #{tpu_custom_call.1} parent=1 // pred_region
      %s25 = ssub.s32 1024, 1024
      %26 = vsyncadd [#allocation11], %s25
      %s27 = sshll.u32 [#allocation10], 4
      %s28 = int_to_ptr.vmem [resolvable:$true] %s27
      %33 = dma.hbm_to_vmem [thread:$0]  %s1, 1024, %s28, [#allocation11], 128, 128, 8
    $region9: #{tpu_custom_call.1} parent=1 // pred_fallthru
      _
    // Predicated region
    $region10: #{tpu_custom_call.1} parent=1 // pred_check
      _
    $region11: #{tpu_custom_call.1} parent=1 // pred_check_branch
      %35 = sbr.rel (0) target = $region13
    $region12: #{tpu_custom_call.1} parent=1 // pred_region
      %36 = dma.done [#allocation8], 1024
    $region13: #{tpu_custom_call.1} parent=1 // pred_fallthru
      _
    // Predicated region
    $region14: #{tpu_custom_call.1} parent=1 // pred_check
      _
    $region15: #{tpu_custom_call.1} parent=1 // pred_check_branch
      %38 = sbr.rel (0) target = $region17
    $region16: #{tpu_custom_call.1} parent=1 // pred_region
      %39 = dma.done [#allocation11], 1024
    $region17: #{tpu_custom_call.1} parent=1 // pred_fallthru
      _
    %p40 = scmp.eq.s32.totalorder 0, 0
    %p41 = scmp.eq.s32.totalorder 0, 0
    %p42 = pnand %p40, %p41
    %p43 = pneg %p42
    // Predicated region
    $region18: #{tpu_custom_call.1} parent=1 // pred_check
      _
    $region19: #{tpu_custom_call.1} parent=1 // pred_check_branch
      %45 = sbr.rel (%p42) target = $region21
    $region20: #{tpu_custom_call.1} parent=1 // pred_region
      %vm46 = vcmask 0
      %47 = vst.msk [vmem:[#allocation6] sm:$0x1] %vm46, 0.0
    $region21: #{tpu_custom_call.1} parent=1 // pred_fallthru
      _
    // Predicated region
    $region22: #{tpu_custom_call.1} parent=1 // pred_check
      %p48 = pneg %p41
    $region23: #{tpu_custom_call.1} parent=1 // pred_check_branch
      %50 = sbr.rel (%p48) target = $region25
    $region24: #{tpu_custom_call.1} parent=1 // pred_region
      %v51 = vld [vmem:[#allocation7] sm:$0xff]
      %v52 = vld [vmem:[#allocation7 + $0x8] sm:$0xff]
      %v53 = vld [vmem:[#allocation7 + $0x10] sm:$0xff]
      %v54 = vld [vmem:[#allocation7 + $0x18] sm:$0xff]
      %v55 = vld [vmem:[#allocation7 + $0x20] sm:$0xff]
      %v56 = vld [vmem:[#allocation7 + $0x28] sm:$0xff]
      %v57 = vld [vmem:[#allocation7 + $0x30] sm:$0xff]
      %v58 = vld [vmem:[#allocation7 + $0x38] sm:$0xff]
      %v59 = vmul.f32 %v51, %v51
      %v60 = vmul.f32 %v52, %v52
      %v61 = vmul.f32 %v53, %v53
      %v62 = vmul.f32 %v54, %v54
      %v63 = vmul.f32 %v55, %v55
      %v64 = vmul.f32 %v56, %v56
      %v65 = vmul.f32 %v57, %v57
      %v66 = vmul.f32 %v58, %v58
      %67 = vadd.xlane.f32.xlu0 %v59
      %v68 = vpop.xlane.xlu0 %67
      %69 = vadd.xlane.f32.xlu0 %v60
      %v70 = vpop.xlane.xlu0 %69
      %71 = vadd.xlane.f32.xlu0 %v61
      %v72 = vpop.xlane.xlu0 %71
      %73 = vadd.xlane.f32.xlu0 %v62
      %v74 = vpop.xlane.xlu0 %73
      %75 = vadd.xlane.f32.xlu0 %v63
      %v76 = vpop.xlane.xlu0 %75
      %77 = vadd.xlane.f32.xlu0 %v64
      %v78 = vpop.xlane.xlu0 %77
      %79 = vadd.xlane.f32.xlu0 %v65
      %v80 = vpop.xlane.xlu0 %79
      %81 = vadd.xlane.f32.xlu0 %v66
      %v82 = vpop.xlane.xlu0 %81
      %v83 = vmax.f32 %v68, 1e-16
      %v84 = vmax.f32 %v70, 1e-16
      %v85 = vmax.f32 %v72, 1e-16
      %v86 = vmax.f32 %v74, 1e-16
      %v87 = vmax.f32 %v76, 1e-16
      %v88 = vmax.f32 %v78, 1e-16
      %v89 = vmax.f32 %v80, 1e-16
      %v90 = vmax.f32 %v82, 1e-16
      %v91 = vrsqrt.pop %v83
      %v92 = vrsqrt.pop %v84
      %v93 = vrsqrt.pop %v85
      %v94 = vrsqrt.pop %v86
      %v95 = vrsqrt.pop %v87
      %v96 = vrsqrt.pop %v88
      %v97 = vrsqrt.pop %v89
      %v98 = vrsqrt.pop %v90
      %v99 = vmul.f32 %v51, %v91
      %v100 = vmul.f32 %v52, %v92
      %v101 = vmul.f32 %v53, %v93
      %v102 = vmul.f32 %v54, %v94
      %v103 = vmul.f32 %v55, %v95
      %v104 = vmul.f32 %v56, %v96
      %v105 = vmul.f32 %v57, %v97
      %v106 = vmul.f32 %v58, %v98
      %107 = vst [vmem:[#allocation2] sm:$0xff] %v99
      %108 = vst [vmem:[#allocation2 + $0x8] sm:$0xff] %v100
      %109 = vst [vmem:[#allocation2 + $0x10] sm:$0xff] %v101
      %110 = vst [vmem:[#allocation2 + $0x18] sm:$0xff] %v102
      %111 = vst [vmem:[#allocation2 + $0x20] sm:$0xff] %v103
      %112 = vst [vmem:[#allocation2 + $0x28] sm:$0xff] %v104
      %113 = vst [vmem:[#allocation2 + $0x30] sm:$0xff] %v105
      %114 = vst [vmem:[#allocation2 + $0x38] sm:$0xff] %v106
      %vm115 = vcmask 7168
      %116 = vst.msk [vmem:[#allocation3] sm:$0xff] %vm115, -1e+30
      %117 = vst.msk [vmem:[#allocation3 + $0x8] sm:$0xff] %vm115, -1e+30
      %118 = vst.msk [vmem:[#allocation3 + $0x10] sm:$0xff] %vm115, -1e+30
      %119 = vst.msk [vmem:[#allocation3 + $0x18] sm:$0xff] %vm115, -1e+30
      %120 = vst.msk [vmem:[#allocation3 + $0x20] sm:$0xff] %vm115, -1e+30
      %121 = vst.msk [vmem:[#allocation3 + $0x28] sm:$0xff] %vm115, -1e+30
      %122 = vst.msk [vmem:[#allocation3 + $0x30] sm:$0xff] %vm115, -1e+30
      %123 = vst.msk [vmem:[#allocation3 + $0x38] sm:$0xff] %vm115, -1e+30
      %124 = vst.msk [vmem:[#allocation4] sm:$0xff] %vm115, 0.0
      %125 = vst.msk [vmem:[#allocation4 + $0x8] sm:$0xff] %vm115, 0.0
      %126 = vst.msk [vmem:[#allocation4 + $0x10] sm:$0xff] %vm115, 0.0
      %127 = vst.msk [vmem:[#allocation4 + $0x18] sm:$0xff] %vm115, 0.0
      %128 = vst.msk [vmem:[#allocation4 + $0x20] sm:$0xff] %vm115, 0.0
      %129 = vst.msk [vmem:[#allocation4 + $0x28] sm:$0xff] %vm115, 0.0
      %130 = vst.msk [vmem:[#allocation4 + $0x30] sm:$0xff] %vm115, 0.0
      %131 = vst.msk [vmem:[#allocation4 + $0x38] sm:$0xff] %vm115, 0.0
      %132 = vst.msk [vmem:[#allocation5] sm:$0xff] %vm115, 0.0
      %133 = vst.msk [vmem:[#allocation5 + $0x8] sm:$0xff] %vm115, 0.0
      %134 = vst.msk [vmem:[#allocation5 + $0x10] sm:$0xff] %vm115, 0.0
      %135 = vst.msk [vmem:[#allocation5 + $0x18] sm:$0xff] %vm115, 0.0
      %136 = vst.msk [vmem:[#allocation5 + $0x20] sm:$0xff] %vm115, 0.0
      %137 = vst.msk [vmem:[#allocation5 + $0x28] sm:$0xff] %vm115, 0.0
      %138 = vst.msk [vmem:[#allocation5 + $0x30] sm:$0xff] %vm115, 0.0
      %139 = vst.msk [vmem:[#allocation5 + $0x38] sm:$0xff] %vm115, 0.0
    $region25: #{tpu_custom_call.1} parent=1 // pred_fallthru
      _
    %v140 = vld [vmem:[#allocation10] sm:$0xff]
    %v141 = vld [vmem:[#allocation10 + $0x8] sm:$0xff]
    %v142 = vld [vmem:[#allocation10 + $0x10] sm:$0xff]
    %v143 = vld [vmem:[#allocation10 + $0x18] sm:$0xff]
    %v144 = vld [vmem:[#allocation10 + $0x20] sm:$0xff]
    %v145 = vld [vmem:[#allocation10 + $0x28] sm:$0xff]
    %v146 = vld [vmem:[#allocation10 + $0x30] sm:$0xff]
    %v147 = vld [vmem:[#allocation10 + $0x38] sm:$0xff]
    %v148 = vmul.f32 %v140, %v140
    %v149 = vmul.f32 %v141, %v141
    %v150 = vmul.f32 %v142, %v142
    %v151 = vmul.f32 %v143, %v143
    %v152 = vmul.f32 %v144, %v144
    %v153 = vmul.f32 %v145, %v145
    %v154 = vmul.f32 %v146, %v146
    %v155 = vmul.f32 %v147, %v147
    %156 = vadd.xlane.f32.xlu0 %v148
    %v157 = vpop.xlane.xlu0 %156
    %158 = vadd.xlane.f32.xlu0 %v149
    %v159 = vpop.xlane.xlu0 %158
    %160 = vadd.xlane.f32.xlu0 %v150
    %v161 = vpop.xlane.xlu0 %160
    %162 = vadd.xlane.f32.xlu0 %v151
    %v163 = vpop.xlane.xlu0 %162
    %164 = vadd.xlane.f32.xlu0 %v152
    %v165 = vpop.xlane.xlu0 %164
    %166 = vadd.xlane.f32.xlu0 %v153
    %v167 = vpop.xlane.xlu0 %166
    %168 = vadd.xlane.f32.xlu0 %v154
    %v169 = vpop.xlane.xlu0 %168
    %170 = vadd.xlane.f32.xlu0 %v155
    %v171 = vpop.xlane.xlu0 %170
    %v172 = vmax.f32 %v157, 1e-16
    %v173 = vmax.f32 %v159, 1e-16
    %v174 = vmax.f32 %v161, 1e-16
    %v175 = vmax.f32 %v163, 1e-16
    %v176 = vmax.f32 %v165, 1e-16
    %v177 = vmax.f32 %v167, 1e-16
    %v178 = vmax.f32 %v169, 1e-16
    %v179 = vmax.f32 %v171, 1e-16
    %v180 = vrsqrt.pop %v172
    %v181 = vrsqrt.pop %v173
    %v182 = vrsqrt.pop %v174
    %v183 = vrsqrt.pop %v175
    %v184 = vrsqrt.pop %v176
    %v185 = vrsqrt.pop %v177
    %v186 = vrsqrt.pop %v178
    %v187 = vrsqrt.pop %v179
    %v188 = vmul.f32 %v140, %v180
    %v189 = vmul.f32 %v141, %v181
    %v190 = vmul.f32 %v142, %v182
    %v191 = vmul.f32 %v143, %v183
    %v192 = vmul.f32 %v144, %v184
    %v193 = vmul.f32 %v145, %v185
    %v194 = vmul.f32 %v146, %v186
    %v195 = vmul.f32 %v147, %v187
    %v196 = vld [vmem:[#allocation2] sm:$0xff]
    %v197 = vld [vmem:[#allocation2 + $0x8] sm:$0xff]
    %v198 = vld [vmem:[#allocation2 + $0x10] sm:$0xff]
    %v199 = vld [vmem:[#allocation2 + $0x18] sm:$0xff]
    %v200 = vld [vmem:[#allocation2 + $0x20] sm:$0xff]
    %v201 = vld [vmem:[#allocation2 + $0x28] sm:$0xff]
    %v202 = vld [vmem:[#allocation2 + $0x30] sm:$0xff]
    %v203 = vld [vmem:[#allocation2 + $0x38] sm:$0xff]
    %204 = vmatprep.subr.mxu0 0.0
    %205 = vmatpush1.xpose.msra.mxu0 0.0
    %206 = vmatprep.subr.mxu0 0.0
    %207 = vmatpush1.xpose.msra.mxu0 0.0
    %208 = vmatprep.subr.mxu0 0.0
    %209 = vmatpush1.xpose.msra.mxu0 0.0
    %210 = vmatprep.subr.mxu0 0.0
    %211 = vmatpush1.xpose.msra.mxu0 0.0
    %212 = vmatprep.subr.mxu0 0.0
    %213 = vmatpush1.xpose.msra.mxu0 0.0
    %214 = vmatprep.subr.mxu0 0.0
    %215 = vmatpush1.xpose.msra.mxu0 0.0
    %216 = vmatprep.subr.mxu0 0.0
    %217 = vmatpush1.xpose.msra.mxu0 0.0
    %218 = vmatprep.subr.mxu0 0.0
    %219 = vmatpush1.xpose.msra.mxu0 0.0
    %220 = vmatprep.subr.mxu0 0.0
    %221 = vmatpush1.xpose.msra.mxu0 %v195
    %222 = vmatprep.subr.mxu0 0.0
    %223 = vmatpush1.xpose.msra.mxu0 %v194
    %224 = vmatprep.subr.mxu0 0.0
    %225 = vmatpush1.xpose.msra.mxu0 %v193
    %226 = vmatprep.subr.mxu0 0.0
    %227 = vmatpush1.xpose.msra.mxu0 %v192
    %228 = vmatprep.subr.mxu0 0.0
    %229 = vmatpush1.xpose.msra.mxu0 %v191
    %230 = vmatprep.subr.mxu0 0.0
    %231 = vmatpush1.xpose.msra.mxu0 %v190
    %232 = vmatprep.subr.mxu0 0.0
    %233 = vmatpush1.xpose.msra.mxu0 %v189
    %234 = vmatprep.subr.mxu0 0.0
    %235 = vmatpush1.xpose.msra.mxu0 %v188
    %236 = vmatprep.subr.mxu0 0.0
    %237 = vmatpush2.xpose.msra.mxu0 0.0
    %238 = vmatprep.subr.mxu0 0.0
    %239 = vmatpush2.xpose.msra.mxu0 0.0
    %240 = vmatprep.subr.mxu0 0.0
    %241 = vmatpush2.xpose.msra.mxu0 0.0
    %242 = vmatprep.subr.mxu0 0.0
    %243 = vmatpush2.xpose.msra.mxu0 0.0
    %244 = vmatprep.subr.mxu0 0.0
    %245 = vmatpush2.xpose.msra.mxu0 0.0
    %246 = vmatprep.subr.mxu0 0.0
    %247 = vmatpush2.xpose.msra.mxu0 0.0
    %248 = vmatprep.subr.mxu0 0.0
    %249 = vmatpush2.xpose.msra.mxu0 0.0
    %250 = vmatprep.subr.mxu0 0.0
    %251 = vmatpush2.xpose.msra.mxu0 0.0
    %252 = vmatprep.subr.mxu0 0.0
    %253 = vmatpush2.xpose.msra.mxu0 0.0
    %254 = vmatprep.subr.mxu0 0.0
    %255 = vmatpush2.xpose.msra.mxu0 0.0
    %256 = vmatprep.subr.mxu0 0.0
    %257 = vmatpush2.xpose.msra.mxu0 0.0
    %258 = vmatprep.subr.mxu0 0.0
    %259 = vmatpush2.xpose.msra.mxu0 0.0
    %260 = vmatprep.subr.mxu0 0.0
    %261 = vmatpush2.xpose.msra.mxu0 0.0
    %262 = vmatprep.subr.mxu0 0.0
    %263 = vmatpush2.xpose.msra.mxu0 0.0
    %264 = vmatprep.subr.mxu0 0.0
    %265 = vmatpush2.xpose.msra.mxu0 0.0
    %266 = vmatprep.subr.mxu0 0.0
    %267 = vmatpush2.xpose.msra.mxu0 0.0
    %268 = vmatprep.mubr.f32.mxu0 0.0
    %269 = vmatmul.mubr.f32.gmra.mxu0 %v196
    %v270 = vpop.f32.mrf.mxu0
    %v271 = vadd.f32 0.0, %v270
    %v272 = vpop.f32.mrf.mxu0
    %273 = vmatprep.mubr.f32.mxu0 0.0
    %274 = vmatmul.mubr.f32.gmra.mxu0 %v197
    %v275 = vpop.f32.mrf.mxu0
    %v276 = vadd.f32 0.0, %v275
    %v277 = vpop.f32.mrf.mxu0
    %278 = vmatprep.mubr.f32.mxu0 0.0
    %279 = vmatmul.mubr.f32.gmra.mxu0 %v198
    %v280 = vpop.f32.mrf.mxu0
    %v281 = vadd.f32 0.0, %v280
    %v282 = vpop.f32.mrf.mxu0
    %283 = vmatprep.mubr.f32.mxu0 0.0
    %284 = vmatmul.mubr.f32.gmra.mxu0 %v199
    %v285 = vpop.f32.mrf.mxu0
    %v286 = vadd.f32 0.0, %v285
    %v287 = vpop.f32.mrf.mxu0
    %288 = vmatprep.mubr.f32.mxu0 0.0
    %289 = vmatmul.mubr.f32.gmra.mxu0 %v200
    %v290 = vpop.f32.mrf.mxu0
    %v291 = vadd.f32 0.0, %v290
    %v292 = vpop.f32.mrf.mxu0
    %293 = vmatprep.mubr.f32.mxu0 0.0
    %294 = vmatmul.mubr.f32.gmra.mxu0 %v201
    %v295 = vpop.f32.mrf.mxu0
    %v296 = vadd.f32 0.0, %v295
    %v297 = vpop.f32.mrf.mxu0
    %298 = vmatprep.mubr.f32.mxu0 0.0
    %299 = vmatmul.mubr.f32.gmra.mxu0 %v202
    %v300 = vpop.f32.mrf.mxu0
    %v301 = vadd.f32 0.0, %v300
    %v302 = vpop.f32.mrf.mxu0
    %303 = vmatprep.mubr.f32.mxu0 0.0
    %304 = vmatmul.mubr.f32.gmra.mxu0 %v203
    %v305 = vpop.f32.mrf.mxu0
    %v306 = vadd.f32 0.0, %v305
    %v307 = vpop.f32.mrf.mxu0
    %308 = vdwg.mxu0
    %v309 = vmul.f32 %v271, 2.0
    %v310 = vmul.f32 %v276, 2.0
    %v311 = vmul.f32 %v281, 2.0
    %v312 = vmul.f32 %v286, 2.0
    %v313 = vmul.f32 %v291, 2.0
    %v314 = vmul.f32 %v296, 2.0
    %v315 = vmul.f32 %v301, 2.0
    %v316 = vmul.f32 %v306, 2.0
    %s317 = smul.u32 0, 64
    %v318 = vlaneseq
    %v319 = vshrl.u32 %v318, 7
    %v320 = vadd.s32 %v319, 8
    %v321 = vadd.s32 %v319, 16
    %v322 = vadd.s32 %v319, 24
    %v323 = vadd.s32 %v319, 32
    %v324 = vadd.s32 %v319, 40
    %v325 = vadd.s32 %v319, 48
    %v326 = vadd.s32 %v319, 56
    %v327 = vstv %s317
    %v328 = vadd.s32 %v327, %v319
    %v329 = vadd.s32 %v327, %v320
    %v330 = vadd.s32 %v327, %v321
    %v331 = vadd.s32 %v327, %v322
    %v332 = vadd.s32 %v327, %v323
    %v333 = vadd.s32 %v327, %v324
    %v334 = vadd.s32 %v327, %v325
    %v335 = vadd.s32 %v327, %v326
    %s336 = smul.u32 0, 64
    %v337 = vlaneseq
    %v338 = vand.u32 %v337, 127
    %v339 = vstv %s336
    %v340 = vadd.s32 %v339, %v338
    %vm341 = vcmp.lt.s32.totalorder %v340, 64
    %vm342 = vcmp.ne.s32.totalorder %v340, %v328
    %vm343 = vcmp.ne.s32.totalorder %v340, %v329
    %vm344 = vcmp.ne.s32.totalorder %v340, %v330
    %vm345 = vcmp.ne.s32.totalorder %v340, %v331
    %vm346 = vcmp.ne.s32.totalorder %v340, %v332
    %vm347 = vcmp.ne.s32.totalorder %v340, %v333
    %vm348 = vcmp.ne.s32.totalorder %v340, %v334
    %vm349 = vcmp.ne.s32.totalorder %v340, %v335
    %vm350 = vmand %vm341, %vm342
    %vm351 = vmand %vm341, %vm343
    %vm352 = vmand %vm341, %vm344
    %vm353 = vmand %vm341, %vm345
    %vm354 = vmand %vm341, %vm346
    %vm355 = vmand %vm341, %vm347
    %vm356 = vmand %vm341, %vm348
    %vm357 = vmand %vm341, %vm349
    %v358 = vsel %vm350, %v309, -1e+30
    %v359 = vsel %vm351, %v310, -1e+30
    %v360 = vsel %vm352, %v311, -1e+30
    %v361 = vsel %vm353, %v312, -1e+30
    %v362 = vsel %vm354, %v313, -1e+30
    %v363 = vsel %vm355, %v314, -1e+30
    %v364 = vsel %vm356, %v315, -1e+30
    %v365 = vsel %vm357, %v316, -1e+30
    %vm366 = vcmp.lt.s32.totalorder %v328, 32
    %vm367 = vcmp.lt.s32.totalorder %v329, 32
    %vm368 = vcmp.lt.s32.totalorder %v330, 32
    %vm369 = vcmp.lt.s32.totalorder %v331, 32
    %vm370 = vcmp.lt.s32.totalorder %v332, 32
    %vm371 = vcmp.lt.s32.totalorder %v333, 32
    %vm372 = vcmp.lt.s32.totalorder %v334, 32
    %vm373 = vcmp.lt.s32.totalorder %v335, 32
    %v374 = vadd.s32 %v328, 32
    %v375 = vadd.s32 %v329, 32
    %v376 = vadd.s32 %v330, 32
    %v377 = vadd.s32 %v331, 32
    %v378 = vadd.s32 %v332, 32
    %v379 = vadd.s32 %v333, 32
    %v380 = vadd.s32 %v334, 32
    %v381 = vadd.s32 %v335, 32
    %v382 = vsub.s32 %v328, 32
    %v383 = vsub.s32 %v329, 32
    %v384 = vsub.s32 %v330, 32
    %v385 = vsub.s32 %v331, 32
    %v386 = vsub.s32 %v332, 32
    %v387 = vsub.s32 %v333, 32
    %v388 = vsub.s32 %v334, 32
    %v389 = vsub.s32 %v335, 32
    %v390 = vsel %vm366, %v374, %v382
    %v391 = vsel %vm367, %v375, %v383
    %v392 = vsel %vm368, %v376, %v384
    %v393 = vsel %vm369, %v377, %v385
    %v394 = vsel %vm370, %v378, %v386
    %v395 = vsel %vm371, %v379, %v387
    %v396 = vsel %vm372, %v380, %v388
    %v397 = vsel %vm373, %v381, %v389
    %v398 = vld [vmem:[#allocation5] sm:$0xff]
    %v399 = vld [vmem:[#allocation5 + $0x8] sm:$0xff]
    %v400 = vld [vmem:[#allocation5 + $0x10] sm:$0xff]
    %v401 = vld [vmem:[#allocation5 + $0x18] sm:$0xff]
    %v402 = vld [vmem:[#allocation5 + $0x20] sm:$0xff]
    %v403 = vld [vmem:[#allocation5 + $0x28] sm:$0xff]
    %v404 = vld [vmem:[#allocation5 + $0x30] sm:$0xff]
    %v405 = vld [vmem:[#allocation5 + $0x38] sm:$0xff]
    %vm406 = vcmp.eq.s32.totalorder %v340, %v390
    %vm407 = vcmp.eq.s32.totalorder %v340, %v391
    %vm408 = vcmp.eq.s32.totalorder %v340, %v392
    %vm409 = vcmp.eq.s32.totalorder %v340, %v393
    %vm410 = vcmp.eq.s32.totalorder %v340, %v394
    %vm411 = vcmp.eq.s32.totalorder %v340, %v395
    %vm412 = vcmp.eq.s32.totalorder %v340, %v396
    %vm413 = vcmp.eq.s32.totalorder %v340, %v397
    %v414 = vsel %vm406, %v309, 0.0
    %v415 = vsel %vm407, %v310, 0.0
    %v416 = vsel %vm408, %v311, 0.0
    %v417 = vsel %vm409, %v312, 0.0
    %v418 = vsel %vm410, %v313, 0.0
    %v419 = vsel %vm411, %v314, 0.0
    %v420 = vsel %vm412, %v315, 0.0
    %v421 = vsel %vm413, %v316, 0.0
    %vm422 = vcmask 523264
    %v423 = vsel %vm422, %v414, 0.0
    %424 = vadd.xlane.f32.xlu0 %v423
    %v425 = vpop.xlane.xlu0 %424
    %v426 = vsel %vm422, %v415, 0.0
    %427 = vadd.xlane.f32.xlu0 %v426
    %v428 = vpop.xlane.xlu0 %427
    %v429 = vsel %vm422, %v416, 0.0
    %430 = vadd.xlane.f32.xlu0 %v429
    %v431 = vpop.xlane.xlu0 %430
    %v432 = vsel %vm422, %v417, 0.0
    %433 = vadd.xlane.f32.xlu0 %v432
    %v434 = vpop.xlane.xlu0 %433
    %v435 = vsel %vm422, %v418, 0.0
    %436 = vadd.xlane.f32.xlu0 %v435
    %v437 = vpop.xlane.xlu0 %436
    %v438 = vsel %vm422, %v419, 0.0
    %439 = vadd.xlane.f32.xlu0 %v438
    %v440 = vpop.xlane.xlu0 %439
    %v441 = vsel %vm422, %v420, 0.0
    %442 = vadd.xlane.f32.xlu0 %v441
    %v443 = vpop.xlane.xlu0 %442
    %v444 = vsel %vm422, %v421, 0.0
    %445 = vadd.xlane.f32.xlu0 %v444
    %v446 = vpop.xlane.xlu0 %445
    %v447 = vadd.f32 %v398, %v425
    %v448 = vadd.f32 %v399, %v428
    %v449 = vadd.f32 %v400, %v431
    %v450 = vadd.f32 %v401, %v434
    %v451 = vadd.f32 %v402, %v437
    %v452 = vadd.f32 %v403, %v440
    %v453 = vadd.f32 %v404, %v443
    %v454 = vadd.f32 %v405, %v446
    %vm455 = vcmask 7168
    %456 = vst.msk [vmem:[#allocation5] sm:$0xff] %vm455, %v447
    %457 = vst.msk [vmem:[#allocation5 + $0x8] sm:$0xff] %vm455, %v448
    %458 = vst.msk [vmem:[#allocation5 + $0x10] sm:$0xff] %vm455, %v449
    %459 = vst.msk [vmem:[#allocation5 + $0x18] sm:$0xff] %vm455, %v450
    %460 = vst.msk [vmem:[#allocation5 + $0x20] sm:$0xff] %vm455, %v451
    %461 = vst.msk [vmem:[#allocation5 + $0x28] sm:$0xff] %vm455, %v452
    %462 = vst.msk [vmem:[#allocation5 + $0x30] sm:$0xff] %vm455, %v453
    %463 = vst.msk [vmem:[#allocation5 + $0x38] sm:$0xff] %vm455, %v454
    %v464 = vld [vmem:[#allocation3] sm:$0xff]
    %v465 = vld [vmem:[#allocation3 + $0x8] sm:$0xff]
    %v466 = vld [vmem:[#allocation3 + $0x10] sm:$0xff]
    %v467 = vld [vmem:[#allocation3 + $0x18] sm:$0xff]
    %v468 = vld [vmem:[#allocation3 + $0x20] sm:$0xff]
    %v469 = vld [vmem:[#allocation3 + $0x28] sm:$0xff]
    %v470 = vld [vmem:[#allocation3 + $0x30] sm:$0xff]
    %v471 = vld [vmem:[#allocation3 + $0x38] sm:$0xff]
    %v472 = vsel %vm422, %v358, -inf
    %473 = vmax.xlane.f32.xlu0 %v472
    %v474 = vpop.xlane.xlu0 %473
    %v475 = vsel %vm422, %v359, -inf
    %476 = vmax.xlane.f32.xlu0 %v475
    %v477 = vpop.xlane.xlu0 %476
    %v478 = vsel %vm422, %v360, -inf
    %479 = vmax.xlane.f32.xlu0 %v478
    %v480 = vpop.xlane.xlu0 %479
    %v481 = vsel %vm422, %v361, -inf
    %482 = vmax.xlane.f32.xlu0 %v481
    %v483 = vpop.xlane.xlu0 %482
    %v484 = vsel %vm422, %v362, -inf
    %485 = vmax.xlane.f32.xlu0 %v484
    %v486 = vpop.xlane.xlu0 %485
    %v487 = vsel %vm422, %v363, -inf
    %488 = vmax.xlane.f32.xlu0 %v487
    %v489 = vpop.xlane.xlu0 %488
    %v490 = vsel %vm422, %v364, -inf
    %491 = vmax.xlane.f32.xlu0 %v490
    %v492 = vpop.xlane.xlu0 %491
    %v493 = vsel %vm422, %v365, -inf
    %494 = vmax.xlane.f32.xlu0 %v493
    %v495 = vpop.xlane.xlu0 %494
    %v496 = vmax.f32 %v464, %v474
    %v497 = vmax.f32 %v465, %v477
    %v498 = vmax.f32 %v466, %v480
    %v499 = vmax.f32 %v467, %v483
    %v500 = vmax.f32 %v468, %v486
    %v501 = vmax.f32 %v469, %v489
    %v502 = vmax.f32 %v470, %v492
    %v503 = vmax.f32 %v471, %v495
    %v504 = vsub.f32 %v464, %v496
    %v505 = vsub.f32 %v465, %v497
    %v506 = vsub.f32 %v466, %v498
    %v507 = vsub.f32 %v467, %v499
    %v508 = vsub.f32 %v468, %v500
    %v509 = vsub.f32 %v469, %v501
    %v510 = vsub.f32 %v470, %v502
    %v511 = vsub.f32 %v471, %v503
    %v512 = vmul.f32 %v504, 1.442695
    %v513 = vpow.pop %v512
    %v514 = vmul.f32 %v505, 1.442695
    %v515 = vpow.pop %v514
    %v516 = vmul.f32 %v506, 1.442695
    %v517 = vpow.pop %v516
    %v518 = vmul.f32 %v507, 1.442695
    %v519 = vpow.pop %v518
    %v520 = vmul.f32 %v508, 1.442695
    %v521 = vpow.pop %v520
    %v522 = vmul.f32 %v509, 1.442695
    %v523 = vpow.pop %v522
    %v524 = vmul.f32 %v510, 1.442695
    %v525 = vpow.pop %v524
    %v526 = vmul.f32 %v511, 1.442695
    %v527 = vpow.pop %v526
    %529 = vset.pattern.permute.xlu0 0
    %530 = vperm.xlu0 %529, %v496
    %v531 = vpop.permute.xlu0 %530
    %534 = vset.pattern.permute.xlu0 0
    %535 = vperm.xlu0 %534, %v497
    %v536 = vpop.permute.xlu0 %535
    %539 = vset.pattern.permute.xlu0 0
    %540 = vperm.xlu0 %539, %v498
    %v541 = vpop.permute.xlu0 %540
    %544 = vset.pattern.permute.xlu0 0
    %545 = vperm.xlu0 %544, %v499
    %v546 = vpop.permute.xlu0 %545
    %549 = vset.pattern.permute.xlu0 0
    %550 = vperm.xlu0 %549, %v500
    %v551 = vpop.permute.xlu0 %550
    %554 = vset.pattern.permute.xlu0 0
    %555 = vperm.xlu0 %554, %v501
    %v556 = vpop.permute.xlu0 %555
    %559 = vset.pattern.permute.xlu0 0
    %560 = vperm.xlu0 %559, %v502
    %v561 = vpop.permute.xlu0 %560
    %564 = vset.pattern.permute.xlu0 0
    %565 = vperm.xlu0 %564, %v503
    %v566 = vpop.permute.xlu0 %565
    %v568 = vsub.f32 %v358, %v531
    %v569 = vsub.f32 %v359, %v536
    %v570 = vsub.f32 %v360, %v541
    %v571 = vsub.f32 %v361, %v546
    %v572 = vsub.f32 %v362, %v551
    %v573 = vsub.f32 %v363, %v556
    %v574 = vsub.f32 %v364, %v561
    %v575 = vsub.f32 %v365, %v566
    %v576 = vmul.f32 %v568, 1.442695
    %v577 = vpow.pop %v576
    %v578 = vmul.f32 %v569, 1.442695
    %v579 = vpow.pop %v578
    %v580 = vmul.f32 %v570, 1.442695
    %v581 = vpow.pop %v580
    %v582 = vmul.f32 %v571, 1.442695
    %v583 = vpow.pop %v582
    %v584 = vmul.f32 %v572, 1.442695
    %v585 = vpow.pop %v584
    %v586 = vmul.f32 %v573, 1.442695
    %v587 = vpow.pop %v586
    %v588 = vmul.f32 %v574, 1.442695
    %v589 = vpow.pop %v588
    %v590 = vmul.f32 %v575, 1.442695
    %v591 = vpow.pop %v590
    %v592 = vld [vmem:[#allocation4] sm:$0xff]
    %v593 = vld [vmem:[#allocation4 + $0x8] sm:$0xff]
    %v594 = vld [vmem:[#allocation4 + $0x10] sm:$0xff]
    %v595 = vld [vmem:[#allocation4 + $0x18] sm:$0xff]
    %v596 = vld [vmem:[#allocation4 + $0x20] sm:$0xff]
    %v597 = vld [vmem:[#allocation4 + $0x28] sm:$0xff]
    %v598 = vld [vmem:[#allocation4 + $0x30] sm:$0xff]
    %v599 = vld [vmem:[#allocation4 + $0x38] sm:$0xff]
    %v600 = vmul.f32 %v513, %v592
    %v601 = vmul.f32 %v515, %v593
    %v602 = vmul.f32 %v517, %v594
    %v603 = vmul.f32 %v519, %v595
    %v604 = vmul.f32 %v521, %v596
    %v605 = vmul.f32 %v523, %v597
    %v606 = vmul.f32 %v525, %v598
    %v607 = vmul.f32 %v527, %v599
    %v608 = vsel %vm422, %v577, 0.0
    %609 = vadd.xlane.f32.xlu0 %v608
    %v610 = vpop.xlane.xlu0 %609
    %v611 = vsel %vm422, %v579, 0.0
    %612 = vadd.xlane.f32.xlu0 %v611
    %v613 = vpop.xlane.xlu0 %612
    %v614 = vsel %vm422, %v581, 0.0
    %615 = vadd.xlane.f32.xlu0 %v614
    %v616 = vpop.xlane.xlu0 %615
    %v617 = vsel %vm422, %v583, 0.0
    %618 = vadd.xlane.f32.xlu0 %v617
    %v619 = vpop.xlane.xlu0 %618
    %v620 = vsel %vm422, %v585, 0.0
    %621 = vadd.xlane.f32.xlu0 %v620
    %v622 = vpop.xlane.xlu0 %621
    %v623 = vsel %vm422, %v587, 0.0
    %624 = vadd.xlane.f32.xlu0 %v623
    %v625 = vpop.xlane.xlu0 %624
    %v626 = vsel %vm422, %v589, 0.0
    %627 = vadd.xlane.f32.xlu0 %v626
    %v628 = vpop.xlane.xlu0 %627
    %v629 = vsel %vm422, %v591, 0.0
    %630 = vadd.xlane.f32.xlu0 %v629
    %v631 = vpop.xlane.xlu0 %630
    %v632 = vadd.f32 %v600, %v610
    %v633 = vadd.f32 %v601, %v613
    %v634 = vadd.f32 %v602, %v616
    %v635 = vadd.f32 %v603, %v619
    %v636 = vadd.f32 %v604, %v622
    %v637 = vadd.f32 %v605, %v625
    %v638 = vadd.f32 %v606, %v628
    %v639 = vadd.f32 %v607, %v631
    %640 = vst.msk [vmem:[#allocation4] sm:$0xff] %vm455, %v632
    %641 = vst.msk [vmem:[#allocation4 + $0x8] sm:$0xff] %vm455, %v633
    %642 = vst.msk [vmem:[#allocation4 + $0x10] sm:$0xff] %vm455, %v634
    %643 = vst.msk [vmem:[#allocation4 + $0x18] sm:$0xff] %vm455, %v635
    %644 = vst.msk [vmem:[#allocation4 + $0x20] sm:$0xff] %vm455, %v636
    %645 = vst.msk [vmem:[#allocation4 + $0x28] sm:$0xff] %vm455, %v637
    %646 = vst.msk [vmem:[#allocation4 + $0x30] sm:$0xff] %vm455, %v638
    %647 = vst.msk [vmem:[#allocation4 + $0x38] sm:$0xff] %vm455, %v639
    %648 = vst.msk [vmem:[#allocation3] sm:$0xff] %vm455, %v496
    %649 = vst.msk [vmem:[#allocation3 + $0x8] sm:$0xff] %vm455, %v497
    %650 = vst.msk [vmem:[#allocation3 + $0x10] sm:$0xff] %vm455, %v498
    %651 = vst.msk [vmem:[#allocation3 + $0x18] sm:$0xff] %vm455, %v499
    %652 = vst.msk [vmem:[#allocation3 + $0x20] sm:$0xff] %vm455, %v500
    %653 = vst.msk [vmem:[#allocation3 + $0x28] sm:$0xff] %vm455, %v501
    %654 = vst.msk [vmem:[#allocation3 + $0x30] sm:$0xff] %vm455, %v502
    %655 = vst.msk [vmem:[#allocation3 + $0x38] sm:$0xff] %vm455, %v503
    // Predicated region
    $region26: #{tpu_custom_call.1} parent=1 // pred_check
      %p656 = pneg %p41
    $region27: #{tpu_custom_call.1} parent=1 // pred_check_branch
      %658 = sbr.rel (%p656) target = $region29
    $region28: #{tpu_custom_call.1} parent=1 // pred_region
      %v659 = vld [vmem:[#allocation3] sm:$0xff]
      %v660 = vld [vmem:[#allocation3 + $0x8] sm:$0xff]
      %v661 = vld [vmem:[#allocation3 + $0x10] sm:$0xff]
      %v662 = vld [vmem:[#allocation3 + $0x18] sm:$0xff]
      %v663 = vld [vmem:[#allocation3 + $0x20] sm:$0xff]
      %v664 = vld [vmem:[#allocation3 + $0x28] sm:$0xff]
      %v665 = vld [vmem:[#allocation3 + $0x30] sm:$0xff]
      %v666 = vld [vmem:[#allocation3 + $0x38] sm:$0xff]
      %v667 = vld [vmem:[#allocation4] sm:$0xff]
      %v668 = vld [vmem:[#allocation4 + $0x8] sm:$0xff]
      %v669 = vld [vmem:[#allocation4 + $0x10] sm:$0xff]
      %v670 = vld [vmem:[#allocation4 + $0x18] sm:$0xff]
      %v671 = vld [vmem:[#allocation4 + $0x20] sm:$0xff]
      %v672 = vld [vmem:[#allocation4 + $0x28] sm:$0xff]
      %v673 = vld [vmem:[#allocation4 + $0x30] sm:$0xff]
      %v674 = vld [vmem:[#allocation4 + $0x38] sm:$0xff]
      %v675 = vlog2.pop %v667
      %v676 = vmul.f32 %v675, 0.6931472
      %v677 = vlog2.pop %v668
      %v678 = vmul.f32 %v677, 0.6931472
      %v679 = vlog2.pop %v669
      %v680 = vmul.f32 %v679, 0.6931472
      %v681 = vlog2.pop %v670
      %v682 = vmul.f32 %v681, 0.6931472
      %v683 = vlog2.pop %v671
      %v684 = vmul.f32 %v683, 0.6931472
      %v685 = vlog2.pop %v672
      %v686 = vmul.f32 %v685, 0.6931472
      %v687 = vlog2.pop %v673
      %v688 = vmul.f32 %v687, 0.6931472
      %v689 = vlog2.pop %v674
      %v690 = vmul.f32 %v689, 0.6931472
      %v691 = vadd.f32 %v659, %v676
      %v692 = vadd.f32 %v660, %v678
      %v693 = vadd.f32 %v661, %v680
      %v694 = vadd.f32 %v662, %v682
      %v695 = vadd.f32 %v663, %v684
      %v696 = vadd.f32 %v664, %v686
      %v697 = vadd.f32 %v665, %v688
      %v698 = vadd.f32 %v666, %v690
      %v699 = vld [vmem:[#allocation5] sm:$0xff]
      %v700 = vld [vmem:[#allocation5 + $0x8] sm:$0xff]
      %v701 = vld [vmem:[#allocation5 + $0x10] sm:$0xff]
      %v702 = vld [vmem:[#allocation5 + $0x18] sm:$0xff]
      %v703 = vld [vmem:[#allocation5 + $0x20] sm:$0xff]
      %v704 = vld [vmem:[#allocation5 + $0x28] sm:$0xff]
      %v705 = vld [vmem:[#allocation5 + $0x30] sm:$0xff]
      %v706 = vld [vmem:[#allocation5 + $0x38] sm:$0xff]
      %v707 = vsub.f32 %v691, %v699
      %v708 = vsub.f32 %v692, %v700
      %v709 = vsub.f32 %v693, %v701
      %v710 = vsub.f32 %v694, %v702
      %v711 = vsub.f32 %v695, %v703
      %v712 = vsub.f32 %v696, %v704
      %v713 = vsub.f32 %v697, %v705
      %v714 = vsub.f32 %v698, %v706
      %vm715 = vcmp.lt.s32.totalorder %v328, 64
      %vm716 = vcmp.lt.s32.totalorder %v329, 64
      %vm717 = vcmp.lt.s32.totalorder %v330, 64
      %vm718 = vcmp.lt.s32.totalorder %v331, 64
      %vm719 = vcmp.lt.s32.totalorder %v332, 64
      %vm720 = vcmp.lt.s32.totalorder %v333, 64
      %vm721 = vcmp.lt.s32.totalorder %v334, 64
      %vm722 = vcmp.lt.s32.totalorder %v335, 64
      %v723 = vsel %vm715, %v707, 0.0
      %v724 = vsel %vm716, %v708, 0.0
      %v725 = vsel %vm717, %v709, 0.0
      %v726 = vsel %vm718, %v710, 0.0
      %v727 = vsel %vm719, %v711, 0.0
      %v728 = vsel %vm720, %v712, 0.0
      %v729 = vsel %vm721, %v713, 0.0
      %v730 = vsel %vm722, %v714, 0.0
      %v731 = vld [vmem:[#allocation6] sm:$0x1]
      %v732 = vsel %vm455, %v723, 0.0
      %v733 = vsel %vm455, %v724, 0.0
      %v734 = vadd.f32 %v732, %v733
      %v735 = vsel %vm455, %v725, 0.0
      %v736 = vadd.f32 %v734, %v735
      %v737 = vsel %vm455, %v726, 0.0
      %v738 = vadd.f32 %v736, %v737
      %v739 = vsel %vm455, %v727, 0.0
      %v740 = vadd.f32 %v738, %v739
      %v741 = vsel %vm455, %v728, 0.0
      %v742 = vadd.f32 %v740, %v741
      %v743 = vsel %vm455, %v729, 0.0
      %v744 = vadd.f32 %v742, %v743
      %v745 = vsel %vm455, %v730, 0.0
      %v746 = vadd.f32 %v744, %v745
      %v747 = vrot.slane %v746, 4
      %v748 = vadd.f32 %v746, %v747
      %v749 = vrot.slane %v748, 2
      %v750 = vadd.f32 %v748, %v749
      %v751 = vrot.slane %v750, 1
      %v752 = vadd.f32 %v750, %v751
      %v753 = vmul.f32 %v752, 0.015625
      %v754 = vadd.f32 %v731, %v753
      %vm755 = vcmask 0
      %756 = vst.msk [vmem:[#allocation6] sm:$0x1] %vm755, %v754
    $region29: #{tpu_custom_call.1} parent=1 // pred_fallthru
      _
    // Predicated region
    $region30: #{tpu_custom_call.1} parent=1 // pred_check
      _
    $region31: #{tpu_custom_call.1} parent=1 // pred_check_branch
      %758 = sbr.rel (%p42) target = $region33
    $region32: #{tpu_custom_call.1} parent=1 // pred_region
      %v759 = vld [vmem:[#allocation6] sm:$0x1]
      %vm760 = vcmask 0
      %761 = vst.msk [vmem:[#allocation12] sm:$0x1] %vm760, %v759
    $region33: #{tpu_custom_call.1} parent=1 // pred_fallthru
      _
    // Predicated region
    $region34: #{tpu_custom_call.1} parent=1 // pred_check
      _
    $region35: #{tpu_custom_call.1} parent=1 // pred_check_branch
      %763 = sbr.rel (0) target = $region37
    $region36: #{tpu_custom_call.1} parent=1 // pred_region
      %s765 = ssub.s32 16, 16
      %766 = vsyncadd [#allocation9], %s765
      %s768 = sshll.u32 [#allocation12], 4
      %s769 = int_to_ptr.vmem [resolvable:$true] %s768
      %771 = dma.vmem_to_hbm [thread:$0]  %s769, 16, %s2, [#allocation9]
    $region37: #{tpu_custom_call.1} parent=1 // pred_fallthru
      _
    // Predicated region
    $region38: #{tpu_custom_call.1} parent=1 // pred_check
      _
    $region39: #{tpu_custom_call.1} parent=1 // pred_check_branch
      %773 = sbr.rel (0) target = $region41
    $region40: #{tpu_custom_call.1} parent=1 // pred_region
      %774 = dma.done [#allocation9], 16
    $region41: #{tpu_custom_call.1} parent=1 // pred_fallthru
      _
    %775 = vsyncpa [#allocation8], 1
    %776 = vsyncpa [#allocation11], 1
    %777 = vsyncpa [#allocation9], 1

</llo_original>
